<compile_context>
chip_gen: v7x
topology: tpu7x:2x2x1
jax: 0.10.0
libtpu: 0.0.40
codegen_flags: <defaults>
</compile_context>

<pallas_src>
import jax
import jax.numpy as jnp
from jax.experimental import pallas as pl
from jax.experimental.pallas import tpu as pltpu


def vae_loss(mu, log_var, x_hat, x, beta, use_beta=True, tm=None, num_cores=2):
    """Pallas implementation of VAE_Loss.forward.

    mu, log_var : (B, D)
    x_hat, x    : (B, C, H, W)  (NCHW, like the PyTorch module)
    beta        : python float / scalar
    returns     : (B,) float32
    """
    B, D = mu.shape

    # Flatten the reconstruction stream to dense (R, 128) rows (free reshape
    # for 128-divisible element counts, which covers all typical conv shapes).
    flat_xh = x_hat.reshape(-1)
    flat_x = x.reshape(-1)
    total = flat_xh.shape[0]
    rem = total % 128
    if rem:
        # Rare fallback (non-128-aligned element count): zero pad contributes 0
        # to the MSE sum. Costs one extra pass only in this corner case.
        pad = 128 - rem
        flat_xh = jnp.pad(flat_xh, (0, pad))
        flat_x = jnp.pad(flat_x, (0, pad))
        total += pad
    R = total // 128
    xh_rows = flat_xh.reshape(R, 128)
    x_rows = flat_x.reshape(R, 128)

    # Tile sizing: ~2 MiB per input tile (dense rows of 128 lanes), TM a
    # multiple of 8 sublanes. 2 inputs x 2 buffers x 2 MiB + 4 KiB scratch
    # stays far below the 48 MiB limit on every generation (incl. v7x 64 MiB).
    itemsize = max(jnp.dtype(xh_rows.dtype).itemsize,
                   jnp.dtype(x_rows.dtype).itemsize)
    if tm is None:
        tm = (2 * 1024 * 1024) // (128 * itemsize)
    if R >= 8:
        TM = max(8, min((tm // 8) * 8, (R // 8) * 8))
    else:
        TM = 8  # single under-full tile (only for tiny <1 KiB inputs); masked.

    tiles_total = pl.cdiv(R, TM)
    NC = max(1, min(num_cores, tiles_total))      # cores ("parallel" axis)
    T = pl.cdiv(tiles_total, NC)                  # reduction tiles per core
    ragged = (R % TM != 0) or (NC * T != tiles_total)

    beta_val = jnp.asarray([float(beta) if use_beta else 1.0], dtype=jnp.float32)

    def x_index(c, k):
        # Clamp phantom over-coverage tiles onto the last valid block; their
        # contribution is zeroed by the in-kernel mask.
        return (jnp.minimum(c * T + k, tiles_total - 1), 0)

    def kernel(beta_ref, mu_ref, lv_ref, xh_ref, x_ref, out_ref, acc_ref):
        c = pl.program_id(0)        # core / parallel axis
        k = pl.program_id(1)        # reduction over feature tiles

        @pl.when(k == 0)
        def _init():
            acc_ref[...] = jnp.zeros_like(acc_ref)

        # Load native-dtype tile, upcast in VMEM, squared diff (pure VPU).
        d = xh_ref[...].astype(jnp.float32) - x_ref[...].astype(jnp.float32)
        if ragged:
            # Zero rows beyond the valid range (ragged last tile / phantom
            # tiles) BEFORE accumulation.
            row0 = (c * T + k) * TM
            rows = jax.lax.broadcasted_iota(jnp.int32, (TM, 128), 0)
            d = jnp.where(rows < (R - row0), d, 0.0)
        # In-register partial reduction into a single (8, 128) vreg tile:
        # groups of 8 rows align exactly with vreg sublanes (no relayout).
        acc_ref[...] += (d * d).reshape(TM // 8, 8, 128).sum(axis=0)

        @pl.when(k == pl.num_programs(1) - 1)
        def _finalize():
            mse = jnp.sum(acc_ref[...])                      # per-core partial
            mu_v = mu_ref[...].astype(jnp.float32)           # (B, D)
            lv_v = lv_ref[...].astype(jnp.float32)           # (B, D)
            kl = -0.5 * jnp.sum(1.0 + lv_v - mu_v * mu_v - jnp.exp(lv_v),
                                axis=1)                      # (B,)
            # Only core 0 carries the (beta-scaled) KL term; other cores emit
            # just their MSE partial so the wrapper sum is exact.
            kl_term = jnp.where(c == 0, beta_ref[0] * kl, jnp.zeros_like(kl))
            vals = kl_term + mse                              # (B,)
            out_ref[...] = jnp.broadcast_to(vals[None, :],
                                            (8, B)).astype(out_ref.dtype)

    out = pl.pallas_call(
        kernel,
        out_shape=jax.ShapeDtypeStruct((NC * 8, B), jnp.float32),
        grid=(NC, T),
        in_specs=[
            pl.BlockSpec(memory_space=pltpu.MemorySpace.SMEM),  # beta scalar
            pl.BlockSpec((B, D), lambda c, k: (0, 0)),          # mu (resident)
            pl.BlockSpec((B, D), lambda c, k: (0, 0)),          # log_var (resident)
            pl.BlockSpec((TM, 128), x_index),                   # x_hat tile
            pl.BlockSpec((TM, 128), x_index),                   # x tile
        ],
        out_specs=pl.BlockSpec((8, B), lambda c, k: (c, 0)),
        scratch_shapes=[pltpu.VMEM((8, 128), jnp.float32)],     # MSE partials
        compiler_params=pltpu.CompilerParams(
            dimension_semantics=("parallel", "arbitrary"),
            vmem_limit_bytes=48 * 1024 * 1024,
        ),
    )(beta_val, mu, log_var, xh_rows, x_rows)

    # Combine per-core partials: core 0 row carries beta*KL + mse_0, others
    # carry their mse partial only.
    return out.reshape(NC, 8, B)[:, 0, :].sum(axis=0)


def _reference(mu, log_var, x_hat, x, beta, use_beta=True):
    mse = jnp.sum((x_hat.astype(jnp.float32) - x.astype(jnp.float32)) ** 2)
    kl = -0.5 * jnp.sum(1.0 + log_var - mu ** 2 - jnp.exp(log_var), axis=1)
    return (beta * kl + mse) if use_beta else (kl + mse)


if __name__ == "__main__":
    key = jax.random.PRNGKey(0)
    k1, k2, k3, k4, k5, k6 = jax.random.split(key, 6)

    B, C, H, W = 2, 4, 16, 16
    D = 32          # latent dim
    beta = 4.0

    mu = jax.random.normal(k1, (B, D), dtype=jnp.float32)
    log_var = 0.1 * jax.random.normal(k2, (B, D), dtype=jnp.float32)
    x = jax.random.normal(k3, (B, C, H, W), dtype=jnp.float32)
    x_hat = x + 0.05 * jax.random.normal(k4, (B, C, H, W), dtype=jnp.float32)

    ref_b = _reference(mu, log_var, x_hat, x, beta, use_beta=True)
    ref_nb = _reference(mu, log_var, x_hat, x, beta, use_beta=False)

    # 1) Default tile size (single tile / single core at this toy size).
    loss = vae_loss(mu, log_var, x_hat, x, beta, use_beta=True)
    jax.block_until_ready(loss)
    assert loss.shape == (B,)
    assert jnp.allclose(loss, ref_b, rtol=1e-5, atol=1e-4), (loss, ref_b)

    # 2) Small tiles -> 2 tiles split across the 2-core "parallel" axis,
    #    exercising the cross-core partial combine.
    loss_tiled = vae_loss(mu, log_var, x_hat, x, beta, use_beta=True, tm=8)
    jax.block_until_ready(loss_tiled)
    assert jnp.allclose(loss_tiled, ref_b, rtol=1e-5, atol=1e-4), (loss_tiled, ref_b)

    # 3) Non-beta branch (loss_func): KL + MSE.
    loss_nb = vae_loss(mu, log_var, x_hat, x, beta, use_beta=False, tm=8)
    jax.block_until_ready(loss_nb)
    assert jnp.allclose(loss_nb, ref_nb, rtol=1e-5, atol=1e-4), (loss_nb, ref_nb)

    # 4) Shape whose row count doesn't divide the tile -> exercises in-kernel
    #    ragged-tile masking (no wrapper-side padding of the big tensors).
    C2 = 3
    x2 = jax.random.normal(k5, (B, C2, H, W), dtype=jnp.float32)
    x_hat2 = x2 + 0.05 * jax.random.normal(k6, (B, C2, H, W), dtype=jnp.float32)
    ref2 = _reference(mu, log_var, x_hat2, x2, beta, use_beta=True)
    loss2 = vae_loss(mu, log_var, x_hat2, x2, beta, use_beta=True, tm=8)
    jax.block_until_ready(loss2)
    assert jnp.allclose(loss2, ref2, rtol=1e-5, atol=1e-4), (loss2, ref2)

    print("KERNEL_OK")
</pallas_src>

<mosaic_0001>
module attributes {stable_mosaic.version = 11 : i64} {
  func.func @kernel(%arg0: i32, %arg1: i32, %arg2: memref<1xf32, #tpu.memory_space<smem>>, %arg3: memref<2x32xf32, #tpu.memory_space<vmem>>, %arg4: memref<2x32xf32, #tpu.memory_space<vmem>>, %arg5: memref<16x128xf32, #tpu.memory_space<vmem>>, %arg6: memref<16x128xf32, #tpu.memory_space<vmem>>, %arg7: memref<8x2xf32, #tpu.memory_space<vmem>>, %arg8: memref<8x128xf32, #tpu.memory_space<vmem>>) attributes {dimension_semantics = [#tpu.dimension_semantics<parallel>, #tpu.dimension_semantics<arbitrary>], iteration_bounds = array<i64: 1, 1>, scalar_prefetch = 0 : i64, scratch_operands = 1 : i64, tpu.core_type = #tpu.core_type<tc>, window_params = [{transform_indices = @transform_0, window_bounds = array<i64: 1>}, {pipeline_mode = #tpu.pipeline_mode<synchronous>, transform_indices = @transform_1, window_bounds = array<i64: 2, 32>}, {pipeline_mode = #tpu.pipeline_mode<synchronous>, transform_indices = @transform_2, window_bounds = array<i64: 2, 32>}, {transform_indices = @transform_3, window_bounds = array<i64: 16, 128>}, {transform_indices = @transform_4, window_bounds = array<i64: 16, 128>}, {transform_indices = @transform_5, window_bounds = array<i64: 8, 2>}]} {
    %c0_i32 = arith.constant 0 : i32
    %0 = arith.cmpi eq, %arg1, %c0_i32 : i32
    %1 = arith.extui %0 : i1 to i32
    %c0_i32_0 = arith.constant 0 : i32
    %2 = arith.cmpi ne, %1, %c0_i32_0 : i32
    scf.if %2 {
      %cst_10 = arith.constant 0.000000e+00 : f32
      %15 = vector.broadcast %cst_10 : f32 to vector<8x128xf32>
      %c0_11 = arith.constant 0 : index
      %c0_12 = arith.constant 0 : index
      %16 = vector.load %arg8[%c0_11, %c0_12] : memref<8x128xf32, #tpu.memory_space<vmem>>, vector<8x128xf32>
      tpu.vector_store %arg8[%c0_11, %c0_12], %15 {strides = array<i32>} : memref<8x128xf32, #tpu.memory_space<vmem>>, vector<8x128xf32>,
    } else {
    }
    %c0 = arith.constant 0 : index
    %c0_1 = arith.constant 0 : index
    %3 = vector.load %arg5[%c0, %c0_1] : memref<16x128xf32, #tpu.memory_space<vmem>>, vector<16x128xf32>
    %c0_2 = arith.constant 0 : index
    %c0_3 = arith.constant 0 : index
    %4 = vector.load %arg6[%c0_2, %c0_3] : memref<16x128xf32, #tpu.memory_space<vmem>>, vector<16x128xf32>
    %5 = arith.subf %3, %4 : vector<16x128xf32>
    %c0_4 = arith.constant 0 : index
    %c0_5 = arith.constant 0 : index
    %6 = vector.load %arg8[%c0_4, %c0_5] : memref<8x128xf32, #tpu.memory_space<vmem>>, vector<8x128xf32>
    %7 = arith.mulf %5, %5 : vector<16x128xf32>
    %8 = vector.shape_cast %7 : vector<16x128xf32> to vector<2x8x128xf32>
    %cst = arith.constant dense<0.000000e+00> : vector<8x128xf32>
    %9 = vector.multi_reduction <add>, %8, %cst [0] : vector<2x8x128xf32> to vector<8x128xf32>
    %10 = arith.addf %6, %9 : vector<8x128xf32>
    %c0_6 = arith.constant 0 : index
    %c0_7 = arith.constant 0 : index
    %11 = vector.load %arg8[%c0_6, %c0_7] : memref<8x128xf32, #tpu.memory_space<vmem>>, vector<8x128xf32>
    tpu.vector_store %arg8[%c0_6, %c0_7], %10 {strides = array<i32>} : memref<8x128xf32, #tpu.memory_space<vmem>>, vector<8x128xf32>,
    %c0_i32_8 = arith.constant 0 : i32
    %12 = arith.cmpi eq, %arg1, %c0_i32_8 : i32
    %13 = arith.extui %12 : i1 to i32
    %c0_i32_9 = arith.constant 0 : i32
    %14 = arith.cmpi ne, %13, %c0_i32_9 : i32
    scf.if %14 {
      %c0_10 = arith.constant 0 : index
      %c0_11 = arith.constant 0 : index
      %15 = vector.load %arg8[%c0_10, %c0_11] : memref<8x128xf32, #tpu.memory_space<vmem>>, vector<8x128xf32>
      %16 = vector.shape_cast %15 : vector<8x128xf32> to vector<1x8x128xf32>
      %cst_12 = arith.constant dense<0.000000e+00> : vector<1xf32>
      %17 = vector.multi_reduction <add>, %16, %cst_12 [1, 2] : vector<1x8x128xf32> to vector<1xf32>
      %18 = vector.shape_cast %17 : vector<1xf32> to vector<1x1x1xf32>
      %19 = vector.extract %18[0, 0, 0] : f32 from vector<1x1x1xf32>
      %c0_13 = arith.constant 0 : index
      %c0_14 = arith.constant 0 : index
      %20 = vector.load %arg3[%c0_13, %c0_14] : memref<2x32xf32, #tpu.memory_space<vmem>>, vector<2x32xf32>
      %c0_15 = arith.constant 0 : index
      %c0_16 = arith.constant 0 : index
      %21 = vector.load %arg4[%c0_15, %c0_16] : memref<2x32xf32, #tpu.memory_space<vmem>>, vector<2x32xf32>
      %cst_17 = arith.constant 1.000000e+00 : f32
      %22 = vector.broadcast %cst_17 : f32 to vector<2x32xf32>
      %23 = arith.addf %22, %21 : vector<2x32xf32>
      %24 = arith.mulf %20, %20 : vector<2x32xf32>
      %25 = arith.subf %23, %24 : vector<2x32xf32>
      %26 = math.exp %21 : vector<2x32xf32>
      %27 = arith.subf %25, %26 : vector<2x32xf32>
      %cst_18 = arith.constant dense<0.000000e+00> : vector<2xf32>
      %28 = vector.multi_reduction <add>, %27, %cst_18 [1] : vector<2x32xf32> to vector<2xf32>
      %cst_19 = arith.constant -5.000000e-01 : f32
      %29 = vector.broadcast %cst_19 : f32 to vector<2xf32>
      %30 = arith.mulf %29, %28 : vector<2xf32>
      %c0_i32_20 = arith.constant 0 : i32
      %31 = arith.cmpi eq, %arg0, %c0_i32_20 : i32
      %c0_21 = arith.constant 0 : index
      %32 = memref.load %arg2[%c0_21] : memref<1xf32, #tpu.memory_space<smem>>
      %33 = vector.broadcast %32 : f32 to vector<2xf32>
      %34 = arith.mulf %33, %30 : vector<2xf32>
      %cst_22 = arith.constant 0.000000e+00 : f32
      %35 = vector.broadcast %cst_22 : f32 to vector<2xf32>
      %36 = arith.select %31, %34, %35 : vector<2xf32>
      %37 = vector.broadcast %19 : f32 to vector<2xf32>
      %38 = arith.addf %36, %37 : vector<2xf32>
      %39 = vector.shape_cast %38 : vector<2xf32> to vector<1x2xf32>
      %40 = vector.shape_cast %39 : vector<1x2xf32> to vector<1x2xf32>
      %41 = vector.broadcast %40 : vector<1x2xf32> to vector<8x2xf32>
      %c0_23 = arith.constant 0 : index
      %c0_24 = arith.constant 0 : index
      %42 = vector.load %arg7[%c0_23, %c0_24] : memref<8x2xf32, #tpu.memory_space<vmem>>, vector<8x2xf32>
      tpu.vector_store %arg7[%c0_23, %c0_24], %41 {strides = array<i32>} : memref<8x2xf32, #tpu.memory_space<vmem>>, vector<8x2xf32>,
    } else {
    }
    return
  }
  func.func @transform_0(%arg0: i32, %arg1: i32) -> i32 {
    %c0_i32 = arith.constant 0 : i32
    %c0_i32_0 = arith.constant 0 : i32
    return %c0_i32 : i32
  }
  func.func @transform_1(%arg0: i32, %arg1: i32) -> (i32, i32) {
    %c0_i32 = arith.constant 0 : i32
    %c0_i32_0 = arith.constant 0 : i32
    %c0_i32_1 = arith.constant 0 : i32
    return %c0_i32, %c0_i32_0 : i32, i32
  }
  func.func @transform_2(%arg0: i32, %arg1: i32) -> (i32, i32) {
    %c0_i32 = arith.constant 0 : i32
    %c0_i32_0 = arith.constant 0 : i32
    %c0_i32_1 = arith.constant 0 : i32
    return %c0_i32, %c0_i32_0 : i32, i32
  }
  func.func @transform_3(%arg0: i32, %arg1: i32) -> (i32, i32) {
    %c1_i32 = arith.constant 1 : i32
    %0 = arith.muli %arg0, %c1_i32 : i32
    %1 = arith.addi %0, %arg1 : i32
    %c0_i32 = arith.constant 0 : i32
    %2 = arith.minsi %1, %c0_i32 : i32
    %c0_i32_0 = arith.constant 0 : i32
    %c0_i32_1 = arith.constant 0 : i32
    return %2, %c0_i32_0 : i32, i32
  }
  func.func @transform_4(%arg0: i32, %arg1: i32) -> (i32, i32) {
    %c1_i32 = arith.constant 1 : i32
    %0 = arith.muli %arg0, %c1_i32 : i32
    %1 = arith.addi %0, %arg1 : i32
    %c0_i32 = arith.constant 0 : i32
    %2 = arith.minsi %1, %c0_i32 : i32
    %c0_i32_0 = arith.constant 0 : i32
    %c0_i32_1 = arith.constant 0 : i32
    return %2, %c0_i32_0 : i32, i32
  }
  func.func @transform_5(%arg0: i32, %arg1: i32) -> (i32, i32) {
    %c0_i32 = arith.constant 0 : i32
    %c0_i32_0 = arith.constant 0 : i32
    return %arg0, %c0_i32 : i32, i32
  }
}

</mosaic_0001>

<llo_original>
// kernel: tpu_custom_call.1
$region0: #{tpu_custom_call.1}
  #allocation0 [shape = 'u32[]', space=smem, size = 0x4, offset = 0x4, fixed_abs, tag = 'smem constant byte address 0x4 - core index']
  #allocation1 [shape = 'u32[144,128]{1,0:T(1,128)}', space=vmem, size = 0x12000, scoped, tag = 'internal scratch']
  #allocation2 [shape = 'f32[8,128]{1,0:T(8,128)}', space=vmem, size = 0x1000, scoped, tag = 'scratch operand']
  #allocation3 [shape = 'f32[1]{0:T(128)S(6)}', space=smem, size = 0x200, scoped, tag = 'scoped memory for tpu_custom_call.1']
  %s0 = inlined_call_operand.<no memory space> [shape: f32[1], index: 0, kind: input, shape index: {}]
  %s1 = inlined_call_operand.vmem [shape: f32[2,32], index: 1, kind: input, shape index: {}]
  %s2 = inlined_call_operand.vmem [shape: f32[2,32], index: 2, kind: input, shape index: {}]
  %s3 = inlined_call_operand.hbm [shape: f32[16,128], index: 3, kind: input, shape index: {}]
  %s4 = inlined_call_operand.hbm [shape: f32[16,128], index: 4, kind: input, shape index: {}]
  %s5 = inlined_call_operand.vmem [shape: f32[8,2], index: 5, kind: output, shape index: {}]
  %s6 = sld [smem:[#allocation0]]
  $region46: #{tpu_custom_call.1} parent=0
    _
  %s8 = ssub.s32 1, %s6
  %s9 = scalar_select 0, %s8, %s6
  %10 = sst [smem:[#allocation3]] %s0
  $region1: #{tpu_custom_call.1} parent=0
    #allocation4 [shape = 'u8[8192]{0}', space=vmem, size = 0x2000, scoped, tag = 'input window, operand 3, single buffered']
    #allocation5 [shape = 's32[1]{0}', space=sflag, size = 0x4, scoped, tag = 'scoped memory for tpu_custom_call.1']
    #allocation6 [shape = 'u8[8192]{0}', space=vmem, size = 0x2000, scoped, tag = 'input window, operand 4, single buffered']
    #allocation7 [shape = 's32[1]{0}', space=sflag, size = 0x4, scoped, tag = 'scoped memory for tpu_custom_call.1']
    %11 = vsyncpa [#allocation5], 0
    %12 = vsyncpa [#allocation7], 0
    // Predicated region
    $region2: #{tpu_custom_call.1} parent=1 // pred_check
      _
    $region3: #{tpu_custom_call.1} parent=1 // pred_check_branch
      %14 = sbr.rel (0) target = $region5
    $region4: #{tpu_custom_call.1} parent=1 // pred_region
      _
    $region5: #{tpu_custom_call.1} parent=1 // pred_fallthru
      _
    // Predicated region
    $region6: #{tpu_custom_call.1} parent=1 // pred_check
      _
    $region7: #{tpu_custom_call.1} parent=1 // pred_check_branch
      %16 = sbr.rel (0) target = $region9
    $region8: #{tpu_custom_call.1} parent=1 // pred_region
      _
    $region9: #{tpu_custom_call.1} parent=1 // pred_fallthru
      _
    // Predicated region
    $region10: #{tpu_custom_call.1} parent=1 // pred_check
      _
    $region11: #{tpu_custom_call.1} parent=1 // pred_check_branch
      %18 = sbr.rel (0) target = $region13
    $region12: #{tpu_custom_call.1} parent=1 // pred_region
      _
    $region13: #{tpu_custom_call.1} parent=1 // pred_fallthru
      _
    // Predicated region
    $region14: #{tpu_custom_call.1} parent=1 // pred_check
      _
    $region15: #{tpu_custom_call.1} parent=1 // pred_check_branch
      %20 = sbr.rel (0) target = $region17
    $region16: #{tpu_custom_call.1} parent=1 // pred_region
      %s21 = sadd.s32 0, 0
      %p22 = scmp.lt.s32.totalorder %s21, 0
      %s23 = scalar_select %p22, %s21, 0
      %s24 = smul.u32 2, %s23
      %s26 = ssub.s32 256, 256
      %27 = vsyncadd [#allocation5], %s26
      %s28 = smul.addr %s24, 128
      %s29 = scalar_lea.hbm %s3, %s28
      %s30 = sshll.u32 [#allocation4], 4
      %s31 = int_to_ptr.vmem [resolvable:$true] %s30
      %36 = dma.hbm_to_vmem [thread:$0]  %s29, 256, %s31, [#allocation5], 128, 128, 8
    $region17: #{tpu_custom_call.1} parent=1 // pred_fallthru
      _
    // Predicated region
    $region18: #{tpu_custom_call.1} parent=1 // pred_check
      _
    $region19: #{tpu_custom_call.1} parent=1 // pred_check_branch
      %38 = sbr.rel (0) target = $region21
    $region20: #{tpu_custom_call.1} parent=1 // pred_region
      %s39 = sadd.s32 0, 0
      %p40 = scmp.lt.s32.totalorder %s39, 0
      %s41 = scalar_select %p40, %s39, 0
      %s42 = smul.u32 2, %s41
      %s44 = ssub.s32 256, 256
      %45 = vsyncadd [#allocation7], %s44
      %s46 = smul.addr %s42, 128
      %s47 = scalar_lea.hbm %s4, %s46
      %s48 = sshll.u32 [#allocation6], 4
      %s49 = int_to_ptr.vmem [resolvable:$true] %s48
      %54 = dma.hbm_to_vmem [thread:$0]  %s47, 256, %s49, [#allocation7], 128, 128, 8
    $region21: #{tpu_custom_call.1} parent=1 // pred_fallthru
      _
    // Predicated region
    $region22: #{tpu_custom_call.1} parent=1 // pred_check
      _
    $region23: #{tpu_custom_call.1} parent=1 // pred_check_branch
      %56 = sbr.rel (0) target = $region25
    $region24: #{tpu_custom_call.1} parent=1 // pred_region
      %57 = dma.done [#allocation5], 256
    $region25: #{tpu_custom_call.1} parent=1 // pred_fallthru
      _
    // Predicated region
    $region26: #{tpu_custom_call.1} parent=1 // pred_check
      _
    $region27: #{tpu_custom_call.1} parent=1 // pred_check_branch
      %59 = sbr.rel (0) target = $region29
    $region28: #{tpu_custom_call.1} parent=1 // pred_region
      %60 = dma.done [#allocation7], 256
    $region29: #{tpu_custom_call.1} parent=1 // pred_fallthru
      _
    %s61 = sadd.s32 0, 0
    %p62 = scmp.lt.s32.totalorder %s61, 0
    %s63 = scalar_select %p62, %s61, 0
    %s64 = smul.u32 2, %s63
    %s65 = sadd.s32 0, 0
    %p66 = scmp.lt.s32.totalorder %s65, 0
    %s67 = scalar_select %p66, %s65, 0
    %s68 = smul.u32 2, %s67
    %p69 = scmp.eq.s32.totalorder 0, 0
    // Predicated region
    $region30: #{tpu_custom_call.1} parent=1 // pred_check
      %p70 = pneg %p69
    $region31: #{tpu_custom_call.1} parent=1 // pred_check_branch
      %72 = sbr.rel (%p70) target = $region33
    $region32: #{tpu_custom_call.1} parent=1 // pred_region
      %73 = vst [vmem:[#allocation2] sm:$0xff] 0.0
    $region33: #{tpu_custom_call.1} parent=1 // pred_fallthru
      _
    %v74 = vld [vmem:[#allocation4] sm:$0xff]
    %v75 = vld [vmem:[#allocation4 + $0x8] sm:$0xff]
    %v76 = vld [vmem:[#allocation6] sm:$0xff]
    %v77 = vld [vmem:[#allocation6 + $0x8] sm:$0xff]
    %v78 = vsub.f32 %v74, %v76
    %v79 = vsub.f32 %v75, %v77
    %v80 = vld [vmem:[#allocation2] sm:$0xff]
    %v81 = vmul.f32 %v78, %v78
    %v82 = vmul.f32 %v79, %v79
    %v83 = vadd.f32 %v81, %v82
    %v84 = vadd.f32 %v80, %v83
    %85 = vst [vmem:[#allocation2] sm:$0xff] %v84
    // Predicated region
    $region34: #{tpu_custom_call.1} parent=1 // pred_check
      %p86 = pneg %p69
    $region35: #{tpu_custom_call.1} parent=1 // pred_check_branch
      %88 = sbr.rel (%p86) target = $region37
    $region36: #{tpu_custom_call.1} parent=1 // pred_region
      %v89 = vld [vmem:[#allocation2] sm:$0xff]
      %90 = vadd.xlane.f32.xlu0 %v89
      %v91 = vpop.xlane.xlu0 %90
      %v92 = vrot.slane %v91, 4
      %v93 = vadd.f32 %v91, %v92
      %v94 = vrot.slane %v93, 2
      %v95 = vadd.f32 %v93, %v94
      %v96 = vrot.slane %v95, 1
      %v97 = vadd.f32 %v95, %v96
      %s98 = vtos %v97
      %v99 = vld [vmem:[%s1] sm:$0x3]
      %v100 = vld [vmem:[%s2] sm:$0x3]
      %v101 = vadd.f32 %v100, 1.0
      %v102 = vmul.f32 %v99, %v99
      %v103 = vsub.f32 %v101, %v102
      %v104 = vmul.f32 %v100, 1.442695
      %v105 = vpow.pop %v104
      %v106 = vsub.f32 %v103, %v105
      %vm107 = vcmask 254976
      %v108 = vsel %vm107, %v106, 0.0
      %109 = vadd.xlane.f32.xlu0 %v108
      %v110 = vpop.xlane.xlu0 %109
      %v111 = vmul.f32 %v110, -0.5
      %p112 = scmp.eq.s32.totalorder 0, 0
      %s113 = sld [smem:[#allocation3]]
      %v114 = vstv %s113
      %v115 = vmul.f32 %v114, %v111
      %s116 = scalar_select %p112, 1, 0
      %v117 = vstv %s116
      %vm118 = vcmp.eq.s32.totalorder %v117, 1
      %v119 = vsel %vm118, %v115, 0.0
      %v120 = vstv %s98
      %v121 = vadd.f32 %v119, %v120
      %v123 = vlaneseq
      %v124 = vand.u32 %v123, 127
      %v125 = vlaneseq
      %v126 = vshrl.u32 %v125, 7
      %v127 = vsub.s32 %v124, %v126
      %v128 = vrot.slane %v121, %v127
      %vm129 = vcmask 1042434
      %v130 = vsel %vm129, %v128, %v128
      %vm131 = vcmask 1043459
      %v132 = vsel %vm131, %v128, %v130
      %vm133 = vcmask 1044484
      %v134 = vsel %vm133, %v128, %v132
      %vm135 = vcmask 1045509
      %v136 = vsel %vm135, %v128, %v134
      %vm137 = vcmask 1046534
      %v138 = vsel %vm137, %v128, %v136
      %vm139 = vcmask 1047559
      %v140 = vsel %vm139, %v128, %v138
      %vm142 = vcmask 15360
      %143 = vst.msk [vmem:[%s5] sm:$0xff] %vm142, %v140
    $region37: #{tpu_custom_call.1} parent=1 // pred_fallthru
      _
    // Predicated region
    $region38: #{tpu_custom_call.1} parent=1 // pred_check
      _
    $region39: #{tpu_custom_call.1} parent=1 // pred_check_branch
      %145 = sbr.rel (0) target = $region41
    $region40: #{tpu_custom_call.1} parent=1 // pred_region
      _
    $region41: #{tpu_custom_call.1} parent=1 // pred_fallthru
      _
    // Predicated region
    $region42: #{tpu_custom_call.1} parent=1 // pred_check
      _
    $region43: #{tpu_custom_call.1} parent=1 // pred_check_branch
      %147 = sbr.rel (0) target = $region45
    $region44: #{tpu_custom_call.1} parent=1 // pred_region
      _
    $region45: #{tpu_custom_call.1} parent=1 // pred_fallthru
      _
    %148 = vsyncpa [#allocation5], 1
    %149 = vsyncpa [#allocation7], 1

</llo_original>
